<compile_context>
chip_gen: v7x
topology: tpu7x:2x2x1
jax: 0.10.0
libtpu: 0.0.40
codegen_flags: <defaults>
</compile_context>

<pallas_src>
import math

import jax
import jax.numpy as jnp
from jax.experimental import pallas as pl
from jax.experimental.pallas import tpu as pltpu


def make_sinusoid_table(n_position: int, d_model: int) -> jnp.ndarray:
    """Deterministic sinusoid encoding table matching the PyTorch init.
    Returns (1, n_position, d_model) float32.  (Odd d_model truncates the cos
    half, where the PyTorch original would raise.)
    NOTE: in a real model, store this pre-cast to the activation dtype so the
    forward pass never touches the f32 master copy."""
    position = jnp.arange(n_position, dtype=jnp.float32)[:, None]            # (P, 1)
    div_term = jnp.exp(
        jnp.arange(0, d_model, 2, dtype=jnp.float32)
        * -(math.log(10000.0) / d_model)
    )                                                                        # (ceil(D/2),)
    angles = position * div_term                                             # (P, ceil(D/2))
    table = jnp.zeros((n_position, d_model), dtype=jnp.float32)
    table = table.at[:, 0::2].set(jnp.sin(angles))
    table = table.at[:, 1::2].set(jnp.cos(angles[:, : d_model // 2]))
    return table[None, :, :]                                                 # (1, P, D)


def _add_pos_kernel(x_ref, pos_ref, o_ref):
    # x_ref: (tB, R, L) or (1, tR, L); pos_ref: (1, R, L) or (1, tR, L).
    # Broadcast over the leading batch dim; cast on store keeps output dtype exact.
    o_ref[...] = (x_ref[...] + pos_ref[...]).astype(o_ref.dtype)


def _round_up(v: int, m: int) -> int:
    return ((v + m - 1) // m) * m


# ~4 MiB per x/out block: on v7x (~3.2 TB/s) this keeps the fixed ~0.35 us
# per-step pipeline overhead well under 10%; fine on v6e; harmless on v5e
# because we raise vmem_limit_bytes explicitly (default scoped VMEM is only
# 16 MiB there).
_TARGET_BLOCK_BYTES = 4 * 1024 * 1024
_MIN_BLOCK_BYTES = 256 * 1024
_VMEM_CAP_BYTES = 56 * 1024 * 1024          # stay under v7x's 64 MiB physical VMEM


def positional_encoding(x: jnp.ndarray, pos_table: jnp.ndarray, *,
                        block_rows: int | None = None) -> jnp.ndarray:
    """x: (B, S, D); pos_table: (1, n_position, D).  Returns x + pos_table[:, :S]."""
    B, S, D = x.shape
    P = pos_table.shape[1]
    if P < S:
        raise ValueError(f"n_position ({P}) must be >= sequence length ({S})")

    dtype = x.dtype
    itemsize = jnp.dtype(dtype).itemsize
    sub = max(8, 32 // itemsize)              # sublane quantum: 8 (f32), 16 (bf16), 32 (int8)

    # Slice + cast ONLY the used [:S] window (cheap; avoids streaming the whole
    # n_position f32 table through HBM every call).  No-op when S == P and the
    # dtypes already match.
    pos = pos_table[:, :S, :].astype(dtype)

    # ---- Lane-dense re-layout: fold g sequence rows into the lane axis. ----
    g = 128 // math.gcd(D, 128)
    if S % g == 0:
        R, L = S // g, D * g                  # L is a multiple of 128 (or == D if already)
    else:
        # TODO(synk): fallback keeps D as the lane dim; if D % 128 != 0 this path
        # has masked vst stores + lane-padded vregs (only hit when S % g != 0).
        R, L = S, D
    x3 = x.reshape(B, R, L)                   # contiguous reshape: free
    pos3 = pos.reshape(1, R, L)

    # ---- Block sizing from LANE-PADDED bytes (honest VMEM accounting). ----
    lane_row_bytes = _round_up(L, 128) * itemsize          # one R-row in VMEM
    slab_rows = _round_up(R, sub)
    slab_bytes = slab_rows * lane_row_bytes                # one batch element, padded
    total_bytes = B * slab_bytes

    # Cap at total/2 so big tensors always give >= 2 grid steps (v7x dual-TC).
    target = min(_TARGET_BLOCK_BYTES, max(_MIN_BLOCK_BYTES, total_bytes // 2))
    target = max(target, lane_row_bytes * sub)             # at least one sublane quantum

    if block_rows is None and slab_bytes <= target:
        # ---- Batch-fold path: short sequences / large batch. ----
        # Block (tB, R, L); the pos block index is constant -> DMA'd once total.
        tB = max(1, min(B, target // slab_bytes))
        grid = (pl.cdiv(B, tB),)
        in_specs = [
            pl.BlockSpec((tB, R, L), lambda b: (b, 0, 0)),   # x tile
            pl.BlockSpec((1, R, L), lambda b: (0, 0, 0)),    # shared pos slab
        ]
        out_specs = pl.BlockSpec((tB, R, L), lambda b: (b, 0, 0))
        dims = ("parallel",)
        block_bytes = tB * slab_bytes
    else:
        # ---- Sequence-tiled path: block (1, tR, L), batch innermost so the
        # shared pos tile is DMA'd once per sequence tile. ----
        if block_rows is None:
            tR = max(sub, (target // lane_row_bytes) // sub * sub)
        else:
            tR = _round_up(max(1, int(block_rows)), sub)
        tR = min(tR, R)                                      # full extent if it covers all
        grid = (pl.cdiv(R, tR), B)
        in_specs = [
            pl.BlockSpec((1, tR, L), lambda r, b: (b, r, 0)),  # per-(r,b) x tile
            pl.BlockSpec((1, tR, L), lambda r, b: (0, r, 0)),  # shared pos tile
        ]
        out_specs = pl.BlockSpec((1, tR, L), lambda r, b: (b, r, 0))
        dims = ("parallel", "parallel")
        block_bytes = _round_up(tR, sub) * lane_row_bytes

    # x + out + pos, double-buffered, plus a little slack; capped under v7x's
    # 64 MiB physical VMEM and above v5e's 16 MiB scoped default.
    vmem_limit = int(min(_VMEM_CAP_BYTES,
                         max(32 * 1024 * 1024, 6 * block_bytes + (2 << 20))))

    out = pl.pallas_call(
        _add_pos_kernel,
        out_shape=jax.ShapeDtypeStruct((B, R, L), dtype),
        grid_spec=pltpu.PrefetchScalarGridSpec(
            num_scalar_prefetch=0,
            grid=grid,
            in_specs=in_specs,
            out_specs=out_specs,
        ),
        compiler_params=pltpu.CompilerParams(
            dimension_semantics=dims,
            vmem_limit_bytes=vmem_limit,
        ),
    )(x3, pos3)
    return out.reshape(B, S, D)


if __name__ == "__main__":
    # 1) Small shapes consistent with the module's forward: (batch, seq, d_model).
    #    D=32 exercises the lane-dense re-layout ((2,8,32) -> (2,2,128)).
    B, S, D = 2, 8, 32
    N_POSITION = 200

    key = jax.random.PRNGKey(0)
    x = jax.random.normal(key, (B, S, D), dtype=jnp.float32)
    pos_table = make_sinusoid_table(N_POSITION, D)

    out = jax.block_until_ready(positional_encoding(x, pos_table))
    ref = x + pos_table[:, :S, :]
    assert out.shape == (B, S, D)
    assert jnp.allclose(out, ref, atol=1e-6), "mismatch vs reference (batch-fold path)"

    # 2) Exercise the sequence-tiled path: bf16, non-dividing sequence length
    #    (partial last block) and an explicit small tile to force many steps.
    B2, S2, D2, P2 = 3, 1000, 256, 1024
    k1, _ = jax.random.split(key)
    x2 = jax.random.normal(k1, (B2, S2, D2), dtype=jnp.bfloat16)
    pos_table2 = make_sinusoid_table(P2, D2)

    out2 = jax.block_until_ready(positional_encoding(x2, pos_table2, block_rows=128))
    ref2 = x2 + pos_table2[:, :S2, :].astype(jnp.bfloat16)
    assert out2.shape == (B2, S2, D2)
    assert jnp.allclose(out2.astype(jnp.float32), ref2.astype(jnp.float32),
                        atol=1e-2), "mismatch vs reference (sequence-tiled path)"

    # 3) Default (auto-tiled) path on the same medium shape, no forced block_rows.
    out3 = jax.block_until_ready(positional_encoding(x2, pos_table2))
    assert jnp.allclose(out3.astype(jnp.float32), ref2.astype(jnp.float32),
                        atol=1e-2), "mismatch vs reference (auto-tiled path)"

    print("KERNEL_OK")
</pallas_src>

<mosaic_0001>
module attributes {stable_mosaic.version = 11 : i64} {
  func.func @_add_pos_kernel(%arg0: i32, %arg1: memref<2x2x128xf32, #tpu.memory_space<vmem>>, %arg2: memref<1x2x128xf32, #tpu.memory_space<vmem>>, %arg3: memref<2x2x128xf32, #tpu.memory_space<vmem>>) attributes {dimension_semantics = [#tpu.dimension_semantics<parallel>], iteration_bounds = array<i64: 1>, scalar_prefetch = 0 : i64, scratch_operands = 0 : i64, tpu.core_type = #tpu.core_type<tc>, window_params = [{transform_indices = @transform_0, window_bounds = array<i64: 2, 2, 128>}, {pipeline_mode = #tpu.pipeline_mode<synchronous>, transform_indices = @transform_1, window_bounds = array<i64: 1, 2, 128>}, {transform_indices = @transform_2, window_bounds = array<i64: 2, 2, 128>}]} {
    %c0 = arith.constant 0 : index
    %c0_0 = arith.constant 0 : index
    %c0_1 = arith.constant 0 : index
    %0 = vector.load %arg1[%c0, %c0_0, %c0_1] : memref<2x2x128xf32, #tpu.memory_space<vmem>>, vector<2x2x128xf32>
    %c0_2 = arith.constant 0 : index
    %c0_3 = arith.constant 0 : index
    %c0_4 = arith.constant 0 : index
    %1 = vector.load %arg2[%c0_2, %c0_3, %c0_4] : memref<1x2x128xf32, #tpu.memory_space<vmem>>, vector<1x2x128xf32>
    %2 = vector.broadcast %1 : vector<1x2x128xf32> to vector<2x2x128xf32>
    %3 = arith.addf %0, %2 : vector<2x2x128xf32>
    %c0_5 = arith.constant 0 : index
    %c0_6 = arith.constant 0 : index
    %c0_7 = arith.constant 0 : index
    %4 = vector.load %arg3[%c0_5, %c0_6, %c0_7] : memref<2x2x128xf32, #tpu.memory_space<vmem>>, vector<2x2x128xf32>
    tpu.vector_store %arg3[%c0_5, %c0_6, %c0_7], %3 {strides = array<i32>} : memref<2x2x128xf32, #tpu.memory_space<vmem>>, vector<2x2x128xf32>,
    return
  }
  func.func @transform_0(%arg0: i32) -> (i32, i32, i32) {
    %c0_i32 = arith.constant 0 : i32
    %c0_i32_0 = arith.constant 0 : i32
    %c0_i32_1 = arith.constant 0 : i32
    return %arg0, %c0_i32, %c0_i32_0 : i32, i32, i32
  }
  func.func @transform_1(%arg0: i32) -> (i32, i32, i32) {
    %c0_i32 = arith.constant 0 : i32
    %c0_i32_0 = arith.constant 0 : i32
    %c0_i32_1 = arith.constant 0 : i32
    %c0_i32_2 = arith.constant 0 : i32
    return %c0_i32, %c0_i32_0, %c0_i32_1 : i32, i32, i32
  }
  func.func @transform_2(%arg0: i32) -> (i32, i32, i32) {
    %c0_i32 = arith.constant 0 : i32
    %c0_i32_0 = arith.constant 0 : i32
    %c0_i32_1 = arith.constant 0 : i32
    return %arg0, %c0_i32, %c0_i32_0 : i32, i32, i32
  }
}

</mosaic_0001>

<llo_original>
// kernel: tpu_custom_call.1
$region0: #{tpu_custom_call.1}
  #allocation0 [shape = 'u32[]', space=smem, size = 0x4, offset = 0x4, fixed_abs, tag = 'smem constant byte address 0x4 - core index']
  #allocation1 [shape = 'u32[144,128]{1,0:T(1,128)}', space=vmem, size = 0x12000, scoped, tag = 'internal scratch']
  %s0 = inlined_call_operand.hbm [shape: f32[2,2,128], index: 0, kind: input, shape index: {}]
  %s1 = inlined_call_operand.vmem [shape: f32[1,2,128], index: 1, kind: input, shape index: {}]
  %s2 = inlined_call_operand.hbm [shape: f32[2,2,128], index: 2, kind: output, shape index: {}]
  %s3 = sld [smem:[#allocation0]]
  $region22: #{tpu_custom_call.1} parent=0
    _
  %s5 = ssub.s32 1, %s3
  %s6 = scalar_select 0, %s5, %s3
  $region1: #{tpu_custom_call.1} parent=0
    #allocation2 [shape = 'u8[2048]{0}', space=vmem, size = 0x800, scoped, tag = 'input window, operand 0, single buffered']
    #allocation3 [shape = 's32[1]{0}', space=sflag, size = 0x4, scoped, tag = 'scoped memory for tpu_custom_call.1']
    #allocation4 [shape = 's32[1]{0}', space=sflag, size = 0x4, scoped, tag = 'scoped memory for tpu_custom_call.1']
    #allocation5 [shape = 'u8[2048]{0}', space=vmem, size = 0x800, scoped, tag = 'output window, operand 0, single buffered']
    %7 = vsyncpa [#allocation3], 0
    %8 = vsyncpa [#allocation4], 0
    // Predicated region
    $region2: #{tpu_custom_call.1} parent=1 // pred_check
      _
    $region3: #{tpu_custom_call.1} parent=1 // pred_check_branch
      %10 = sbr.rel (0) target = $region5
    $region4: #{tpu_custom_call.1} parent=1 // pred_region
      %s12 = ssub.s32 64, 64
      %13 = vsyncadd [#allocation3], %s12
      %s14 = sshll.u32 [#allocation2], 4
      %s15 = int_to_ptr.vmem [resolvable:$true] %s14
      %20 = dma.hbm_to_vmem [thread:$0]  %s0, 64, %s15, [#allocation3], 32, 32, 2
    $region5: #{tpu_custom_call.1} parent=1 // pred_fallthru
      _
    // Predicated region
    $region6: #{tpu_custom_call.1} parent=1 // pred_check
      _
    $region7: #{tpu_custom_call.1} parent=1 // pred_check_branch
      %22 = sbr.rel (0) target = $region9
    $region8: #{tpu_custom_call.1} parent=1 // pred_region
      _
    $region9: #{tpu_custom_call.1} parent=1 // pred_fallthru
      _
    // Predicated region
    $region10: #{tpu_custom_call.1} parent=1 // pred_check
      _
    $region11: #{tpu_custom_call.1} parent=1 // pred_check_branch
      %24 = sbr.rel (0) target = $region13
    $region12: #{tpu_custom_call.1} parent=1 // pred_region
      %25 = dma.done [#allocation3], 64
    $region13: #{tpu_custom_call.1} parent=1 // pred_fallthru
      _
    %v26 = vld [vmem:[#allocation2] sm:$0x3]
    %v27 = vld [vmem:[#allocation2 + $0x2] sm:$0x3]
    %v28 = vld [vmem:[%s1] sm:$0x3]
    %v29 = vadd.f32 %v26, %v28
    %v30 = vadd.f32 %v27, %v28
    %31 = vst [vmem:[#allocation5] sm:$0x3] %v29
    %32 = vst [vmem:[#allocation5 + $0x2] sm:$0x3] %v30
    // Predicated region
    $region14: #{tpu_custom_call.1} parent=1 // pred_check
      _
    $region15: #{tpu_custom_call.1} parent=1 // pred_check_branch
      %34 = sbr.rel (0) target = $region17
    $region16: #{tpu_custom_call.1} parent=1 // pred_region
      %s36 = ssub.s32 64, 64
      %37 = vsyncadd [#allocation4], %s36
      %s38 = sshll.u32 [#allocation5], 4
      %s39 = int_to_ptr.vmem [resolvable:$true] %s38
      %44 = dma.vmem_to_hbm [thread:$0]  %s39, 64, %s2, [#allocation4], 32, 32, 2
    $region17: #{tpu_custom_call.1} parent=1 // pred_fallthru
      _
    // Predicated region
    $region18: #{tpu_custom_call.1} parent=1 // pred_check
      _
    $region19: #{tpu_custom_call.1} parent=1 // pred_check_branch
      %46 = sbr.rel (0) target = $region21
    $region20: #{tpu_custom_call.1} parent=1 // pred_region
      %47 = dma.done [#allocation4], 64
    $region21: #{tpu_custom_call.1} parent=1 // pred_fallthru
      _
    %48 = vsyncpa [#allocation3], 1
    %49 = vsyncpa [#allocation4], 1

</llo_original>
